<compile_context>
chip_gen: v7x
topology: tpu7x:2x2x1
jax: 0.10.0
libtpu: 0.0.40
codegen_flags: <defaults>
</compile_context>

<pallas_src>
import functools

import jax
import jax.numpy as jnp
from jax.experimental import pallas as pl
from jax.experimental.pallas import tpu as pltpu

LANE = 128     # TPU vreg lane width
HIDDEN = 64    # feature_dim / hidden width of the module


def _round_up(n, m):
    return ((n + m - 1) // m) * m


def _choose_batch_tile(B, block_b):
    """Batch tile: multiple of 8, as big as block_b, but >= 2 grid steps for
    moderate B so "parallel" can shard across both TensorCores on v7x."""
    if B <= 16:
        return _round_up(B, 8)
    return min(block_b, _round_up(-(-B // 2), 8))


def _ac_kernel(x_ref, wf_ref, bf_ref, wpv_ref, bpv_ref, whead_ref, bhead_ref,
               probs_ref, values_ref, *, action_dim, batch_size):
    # MXU is bf16-native: cast activations to bf16 only at the dot operands;
    # keep elementwise math (ReLU, exp, softmax sums) in f32.
    x = x_ref[...].astype(jnp.bfloat16)

    # feature net: Linear + ReLU (f32 accumulation)
    feat = jnp.dot(x, wf_ref[...], preferred_element_type=jnp.float32) + bf_ref[...]
    feat = jnp.maximum(feat, 0.0)

    # fused policy/value hidden layer: [pol | v1] = ReLU(feat @ [Wp|Wv1] + [bp|bv1])
    pv = jnp.dot(feat.astype(jnp.bfloat16), wpv_ref[...],
                 preferred_element_type=jnp.float32) + bpv_ref[...]
    pv = jnp.maximum(pv, 0.0)

    # fused head: block-diagonal [[Wa, 0], [0, Wv2]] zero-padded to 128 lanes
    #   lanes [0:action_dim] -> action logits, lane action_dim -> value
    head = jnp.dot(pv.astype(jnp.bfloat16), whead_ref[...],
                   preferred_element_type=jnp.float32) + bhead_ref[...]

    tb = head.shape[0]
    lane = jax.lax.broadcasted_iota(jnp.int32, head.shape, 1)
    row = jax.lax.broadcasted_iota(jnp.int32, head.shape, 0) + pl.program_id(0) * tb
    is_logit = lane < action_dim
    valid = row < batch_size          # mask ragged tail rows of the last block

    # masked softmax over the logit lanes; EXACT divide (sum-to-1 to f32 precision)
    logits = jnp.where(is_logit, head, jnp.float32(-1e30))
    m = jnp.max(logits, axis=-1, keepdims=True)
    e = jnp.exp(logits - m)                      # masked lanes underflow to 0
    denom = jnp.sum(e, axis=-1, keepdims=True)
    probs = e / denom

    # lane-dense bf16 probs slab: probs in [0:action_dim], zeros elsewhere
    probs_ref[...] = jnp.where(jnp.logical_and(valid, is_logit),
                               probs, 0.0).astype(probs_ref.dtype)

    # f32 values stream (tiny): pick out the value lane with a lane reduce
    vals = jnp.sum(jnp.where(jnp.logical_and(valid, lane == action_dim), head, 0.0),
                   axis=-1, keepdims=True)
    values_ref[...] = vals.astype(values_ref.dtype)


def pack_params(params, action_dim):
    """Host-side weight packing for the fused matmuls (weights -> bf16, biases f32)."""
    wf = params["wf"].astype(jnp.bfloat16)
    bf = params["bf"].astype(jnp.float32)

    wpv = jnp.concatenate([params["wp"], params["wv1"]], axis=1).astype(jnp.bfloat16)
    bpv = jnp.concatenate([params["bp"], params["bv1"]], axis=1).astype(jnp.float32)

    whead = jnp.zeros((2 * HIDDEN, LANE), jnp.float32)
    whead = whead.at[:HIDDEN, :action_dim].set(params["wa"])        # pol -> logits
    whead = whead.at[HIDDEN:, action_dim].set(params["wv2"][:, 0])  # v1  -> value
    whead = whead.astype(jnp.bfloat16)

    bhead = jnp.zeros((1, LANE), jnp.float32)
    bhead = bhead.at[0, :action_dim].set(params["ba"][0])
    bhead = bhead.at[0, action_dim].set(params["bv2"][0, 0])
    return wf, bf, wpv, bpv, whead, bhead


def _nbytes(a):
    return a.size * a.dtype.itemsize


def _forward_impl(x, params, *, block_b=1024):
    """x: (B, state_dim) float32. Returns ([probs], values) like the torch module."""
    B, state_dim = x.shape
    action_dim = params["wa"].shape[1]
    assert action_dim + 1 <= LANE, "action_dim must fit in one 128-lane output slab"
    assert params["wf"].shape == (state_dim, HIDDEN)

    wf, bf, wpv, bpv, whead, bhead = pack_params(params, action_dim)

    tb = _choose_batch_tile(B, block_b)
    grid = (pl.cdiv(B, tb),)          # no host-side padding; last block is ragged

    # weights/biases: full-array blocks, same block every step -> VMEM-resident
    resident = lambda a: pl.BlockSpec(a.shape, lambda i: (0, 0))
    in_specs = [
        pl.BlockSpec((tb, state_dim), lambda i: (i, 0)),   # x batch tile
        resident(wf), resident(bf),
        resident(wpv), resident(bpv),
        resident(whead), resident(bhead),
    ]
    out_specs = (
        pl.BlockSpec((tb, LANE), lambda i: (i, 0)),        # bf16 probs slab
        pl.BlockSpec((tb, 1), lambda i: (i, 0)),           # f32 values
    )
    out_shape = (
        jax.ShapeDtypeStruct((B, LANE), jnp.bfloat16),
        jax.ShapeDtypeStruct((B, 1), jnp.float32),
    )

    flops = 2 * B * (state_dim * HIDDEN + HIDDEN * 2 * HIDDEN + 2 * HIDDEN * LANE)
    transcendentals = B * (LANE + 1)          # exps + one reciprocal per row
    bytes_accessed = (_nbytes(x) + B * LANE * 2 + B * 4
                      + _nbytes(wf) + _nbytes(bf) + _nbytes(wpv) + _nbytes(bpv)
                      + _nbytes(whead) + _nbytes(bhead))
    cost = pl.CostEstimate(flops=flops, transcendentals=transcendentals,
                           bytes_accessed=bytes_accessed)

    probs_slab, values = pl.pallas_call(
        functools.partial(_ac_kernel, action_dim=action_dim, batch_size=B),
        out_shape=out_shape,
        grid=grid,
        in_specs=in_specs,
        out_specs=out_specs,
        compiler_params=pltpu.CompilerParams(
            dimension_semantics=("parallel",)),   # shards batch tiles across TCs on v7x
        cost_estimate=cost,
    )(x, wf, bf, wpv, bpv, whead, bhead)

    # Slice + upcast the probs payload; under the surrounding jit this fuses
    # with the consumer instead of making an extra HBM pass.
    probs = probs_slab[:, :action_dim].astype(jnp.float32)
    return [probs], values


@jax.jit
def actor_critic_forward(x, params):
    return _forward_impl(x, params)


def init_params(key, state_dim, hidden, action_dim):
    ks = jax.random.split(key, 10)

    def lin(kw, kb, n_in, n_out):
        bound = 1.0 / jnp.sqrt(n_in)
        w = jax.random.uniform(kw, (n_in, n_out), jnp.float32, -bound, bound)
        b = jax.random.uniform(kb, (1, n_out), jnp.float32, -bound, bound)
        return w, b

    wf, bf = lin(ks[0], ks[1], state_dim, hidden)    # feature net
    wp, bp = lin(ks[2], ks[3], hidden, hidden)       # policy net
    wv1, bv1 = lin(ks[4], ks[5], hidden, hidden)     # value net layer 1
    wv2, bv2 = lin(ks[6], ks[7], hidden, 1)          # value net layer 2
    wa, ba = lin(ks[8], ks[9], hidden, action_dim)   # action head
    return dict(wf=wf, bf=bf, wp=wp, bp=bp, wv1=wv1, bv1=bv1,
                wv2=wv2, bv2=bv2, wa=wa, ba=ba)


def reference_forward_f32(x, p):
    """Pure f32 reference (module semantics)."""
    feat = jax.nn.relu(x @ p["wf"] + p["bf"])
    pol = jax.nn.relu(feat @ p["wp"] + p["bp"])
    v1 = jax.nn.relu(feat @ p["wv1"] + p["bv1"])
    values = v1 @ p["wv2"] + p["bv2"]
    probs = jax.nn.softmax(pol @ p["wa"] + p["ba"], axis=-1)
    return probs, values


def reference_forward_mixed(x, p):
    """Reference with the same bf16-operand / f32-accumulate numerics as the kernel."""
    def mm(a, w):
        return jnp.dot(a.astype(jnp.bfloat16), w.astype(jnp.bfloat16),
                       preferred_element_type=jnp.float32)
    feat = jax.nn.relu(mm(x, p["wf"]) + p["bf"])
    pol = jax.nn.relu(mm(feat, p["wp"]) + p["bp"])
    v1 = jax.nn.relu(mm(feat, p["wv1"]) + p["bv1"])
    values = mm(v1, p["wv2"]) + p["bv2"]
    probs = jax.nn.softmax(mm(pol, p["wa"]) + p["ba"], axis=-1)
    return probs, values


def _check(x, params, action_dim):
    probs_list, values = actor_critic_forward(x, params)
    probs = probs_list[0]
    jax.block_until_ready((probs, values))

    assert probs.shape == (x.shape[0], action_dim)
    assert values.shape == (x.shape[0], 1)

    # vs matched-precision reference: only the bf16 probs-output rounding
    # (<= 0.0039 * p) and accumulation-order ulps remain.
    ref_probs_m, ref_values_m = reference_forward_mixed(x, params)
    assert jnp.allclose(probs, ref_probs_m, atol=5e-3), "probs mismatch (mixed ref)"
    assert jnp.allclose(values, ref_values_m, atol=1e-4), "values mismatch (mixed ref)"

    # vs pure f32 reference: bounds the bf16 operand-quantization drift.
    ref_probs, ref_values = reference_forward_f32(x, params)
    assert jnp.allclose(probs, ref_probs, atol=3e-2), "probs mismatch (f32 ref)"
    assert jnp.allclose(values, ref_values, atol=3e-2), "values mismatch (f32 ref)"

    # exact-divide softmax: normalization holds up to the bf16 output rounding.
    assert jnp.allclose(jnp.sum(probs, axis=-1), 1.0, atol=5e-3), "probs do not sum to 1"


if __name__ == "__main__":
    key = jax.random.PRNGKey(0)
    k_x1, k_x2, k_p = jax.random.split(key, 3)

    state_dim = 32    # env_config.state_dim (small synthetic)
    hidden = 64       # feature_dim / hidden width of the module
    action_dim = 8    # env_config.action_dim (discrete)

    params = init_params(k_p, state_dim, hidden, action_dim)

    # small batch (single grid step)
    x_small = jax.random.normal(k_x1, (8, state_dim), dtype=jnp.float32)
    _check(x_small, params, action_dim)

    # larger batch, not a multiple of the tile: exercises the 2-step grid and
    # the ragged (masked) final block without any host-side padding.
    x_big = jax.random.normal(k_x2, (1000, state_dim), dtype=jnp.float32)
    _check(x_big, params, action_dim)

    print("KERNEL_OK")
</pallas_src>

<mosaic_0001>
module attributes {stable_mosaic.version = 11 : i64} {
  func.func @_ac_kernel(%arg0: i32, %arg1: memref<8x32xf32, #tpu.memory_space<vmem>>, %arg2: memref<32x64xbf16, #tpu.memory_space<vmem>>, %arg3: memref<1x64xf32, #tpu.memory_space<vmem>>, %arg4: memref<64x128xbf16, #tpu.memory_space<vmem>>, %arg5: memref<1x128xf32, #tpu.memory_space<vmem>>, %arg6: memref<128x128xbf16, #tpu.memory_space<vmem>>, %arg7: memref<1x128xf32, #tpu.memory_space<vmem>>, %arg8: memref<8x128xbf16, #tpu.memory_space<vmem>>, %arg9: memref<8x1xf32, #tpu.memory_space<vmem>>) attributes {dimension_semantics = [#tpu.dimension_semantics<parallel>], iteration_bounds = array<i64: 1>, scalar_prefetch = 0 : i64, scratch_operands = 0 : i64, tpu.core_type = #tpu.core_type<tc>, window_params = [{transform_indices = @transform_0, window_bounds = array<i64: 8, 32>}, {pipeline_mode = #tpu.pipeline_mode<synchronous>, transform_indices = @transform_1, window_bounds = array<i64: 32, 64>}, {pipeline_mode = #tpu.pipeline_mode<synchronous>, transform_indices = @transform_2, window_bounds = array<i64: 1, 64>}, {pipeline_mode = #tpu.pipeline_mode<synchronous>, transform_indices = @transform_3, window_bounds = array<i64: 64, 128>}, {pipeline_mode = #tpu.pipeline_mode<synchronous>, transform_indices = @transform_4, window_bounds = array<i64: 1, 128>}, {pipeline_mode = #tpu.pipeline_mode<synchronous>, transform_indices = @transform_5, window_bounds = array<i64: 128, 128>}, {pipeline_mode = #tpu.pipeline_mode<synchronous>, transform_indices = @transform_6, window_bounds = array<i64: 1, 128>}, {transform_indices = @transform_7, window_bounds = array<i64: 8, 128>}, {transform_indices = @transform_8, window_bounds = array<i64: 8, 1>}]} {
    %c0 = arith.constant 0 : index
    %c0_0 = arith.constant 0 : index
    %0 = vector.load %arg1[%c0, %c0_0] : memref<8x32xf32, #tpu.memory_space<vmem>>, vector<8x32xf32>
    %1 = arith.truncf %0 : vector<8x32xf32> to vector<8x32xbf16>
    %c0_1 = arith.constant 0 : index
    %c0_2 = arith.constant 0 : index
    %2 = vector.load %arg2[%c0_1, %c0_2] : memref<32x64xbf16, #tpu.memory_space<vmem>>, vector<32x64xbf16>
    %cst = arith.constant dense<0.000000e+00> : vector<8x64xf32>
    %3 = tpu.matmul %1, %2, %cst {dimension_numbers = #tpu.dot_dimension_numbers<[1], [0], [0], [1], [0, 0, 1, 1], [], []>} : vector<8x32xbf16>, vector<32x64xbf16>, vector<8x64xf32> -> vector<8x64xf32>
    %c0_3 = arith.constant 0 : index
    %c0_4 = arith.constant 0 : index
    %4 = vector.load %arg3[%c0_3, %c0_4] : memref<1x64xf32, #tpu.memory_space<vmem>>, vector<1x64xf32>
    %5 = vector.broadcast %4 : vector<1x64xf32> to vector<8x64xf32>
    %6 = arith.addf %3, %5 : vector<8x64xf32>
    %cst_5 = arith.constant 0.000000e+00 : f32
    %7 = vector.broadcast %cst_5 : f32 to vector<8x64xf32>
    %8 = arith.maximumf %6, %7 : vector<8x64xf32>
    %9 = arith.truncf %8 : vector<8x64xf32> to vector<8x64xbf16>
    %c0_6 = arith.constant 0 : index
    %c0_7 = arith.constant 0 : index
    %10 = vector.load %arg4[%c0_6, %c0_7] : memref<64x128xbf16, #tpu.memory_space<vmem>>, vector<64x128xbf16>
    %cst_8 = arith.constant dense<0.000000e+00> : vector<8x128xf32>
    %11 = tpu.matmul %9, %10, %cst_8 {dimension_numbers = #tpu.dot_dimension_numbers<[1], [0], [0], [1], [0, 0, 1, 1], [], []>} : vector<8x64xbf16>, vector<64x128xbf16>, vector<8x128xf32> -> vector<8x128xf32>
    %c0_9 = arith.constant 0 : index
    %c0_10 = arith.constant 0 : index
    %12 = vector.load %arg5[%c0_9, %c0_10] : memref<1x128xf32, #tpu.memory_space<vmem>>, vector<1x128xf32>
    %13 = vector.broadcast %12 : vector<1x128xf32> to vector<8x128xf32>
    %14 = arith.addf %11, %13 : vector<8x128xf32>
    %cst_11 = arith.constant 0.000000e+00 : f32
    %15 = vector.broadcast %cst_11 : f32 to vector<8x128xf32>
    %16 = arith.maximumf %14, %15 : vector<8x128xf32>
    %17 = arith.truncf %16 : vector<8x128xf32> to vector<8x128xbf16>
    %c0_12 = arith.constant 0 : index
    %c0_13 = arith.constant 0 : index
    %18 = vector.load %arg6[%c0_12, %c0_13] : memref<128x128xbf16, #tpu.memory_space<vmem>>, vector<128x128xbf16>
    %cst_14 = arith.constant dense<0.000000e+00> : vector<8x128xf32>
    %19 = tpu.matmul %17, %18, %cst_14 {dimension_numbers = #tpu.dot_dimension_numbers<[1], [0], [0], [1], [0, 0, 1, 1], [], []>} : vector<8x128xbf16>, vector<128x128xbf16>, vector<8x128xf32> -> vector<8x128xf32>
    %c0_15 = arith.constant 0 : index
    %c0_16 = arith.constant 0 : index
    %20 = vector.load %arg7[%c0_15, %c0_16] : memref<1x128xf32, #tpu.memory_space<vmem>>, vector<1x128xf32>
    %21 = vector.broadcast %20 : vector<1x128xf32> to vector<8x128xf32>
    %22 = arith.addf %19, %21 : vector<8x128xf32>
    %23 = tpu.iota {dimensions = array<i32: 1>} : vector<8x128xi32>
    %24 = tpu.iota {dimensions = array<i32: 0>} : vector<8x128xi32>
    %c8_i32 = arith.constant 8 : i32
    %25 = arith.muli %arg0, %c8_i32 : i32
    %26 = vector.broadcast %25 : i32 to vector<8x128xi32>
    %27 = arith.addi %24, %26 : vector<8x128xi32>
    %c8_i32_17 = arith.constant 8 : i32
    %28 = vector.broadcast %c8_i32_17 : i32 to vector<8x128xi32>
    %29 = arith.cmpi slt, %23, %28 : vector<8x128xi32>
    %c8_i32_18 = arith.constant 8 : i32
    %30 = vector.broadcast %c8_i32_18 : i32 to vector<8x128xi32>
    %31 = arith.cmpi slt, %27, %30 : vector<8x128xi32>
    %cst_19 = arith.constant -1.000000e+30 : f32
    %32 = vector.broadcast %cst_19 : f32 to vector<8x128xf32>
    %33 = arith.select %29, %22, %32 : vector<8x128xi1>, vector<8x128xf32>
    %cst_20 = arith.constant dense<0xFF800000> : vector<8xf32>
    %34 = vector.multi_reduction <maximumf>, %33, %cst_20 [1] : vector<8x128xf32> to vector<8xf32>
    %35 = vector.shape_cast %34 : vector<8xf32> to vector<8x1xf32>
    %36 = vector.broadcast %35 : vector<8x1xf32> to vector<8x128xf32>
    %37 = arith.subf %33, %36 : vector<8x128xf32>
    %38 = math.exp %37 : vector<8x128xf32>
    %cst_21 = arith.constant dense<0.000000e+00> : vector<8xf32>
    %39 = vector.multi_reduction <add>, %38, %cst_21 [1] : vector<8x128xf32> to vector<8xf32>
    %40 = vector.shape_cast %39 : vector<8xf32> to vector<8x1xf32>
    %41 = vector.broadcast %40 : vector<8x1xf32> to vector<8x128xf32>
    %42 = arith.divf %38, %41 : vector<8x128xf32>
    %43 = arith.andi %31, %29 : vector<8x128xi1>
    %cst_22 = arith.constant 0.000000e+00 : f32
    %44 = vector.broadcast %cst_22 : f32 to vector<8x128xf32>
    %45 = arith.select %43, %42, %44 : vector<8x128xi1>, vector<8x128xf32>
    %46 = arith.truncf %45 : vector<8x128xf32> to vector<8x128xbf16>
    %c0_23 = arith.constant 0 : index
    %c0_24 = arith.constant 0 : index
    %47 = vector.load %arg8[%c0_23, %c0_24] : memref<8x128xbf16, #tpu.memory_space<vmem>>, vector<8x128xbf16>
    tpu.vector_store %arg8[%c0_23, %c0_24], %46 {strides = array<i32>} : memref<8x128xbf16, #tpu.memory_space<vmem>>, vector<8x128xbf16>,
    %c8_i32_25 = arith.constant 8 : i32
    %48 = vector.broadcast %c8_i32_25 : i32 to vector<8x128xi32>
    %49 = arith.cmpi eq, %23, %48 : vector<8x128xi32>
    %50 = arith.andi %31, %49 : vector<8x128xi1>
    %cst_26 = arith.constant 0.000000e+00 : f32
    %51 = vector.broadcast %cst_26 : f32 to vector<8x128xf32>
    %52 = arith.select %50, %22, %51 : vector<8x128xi1>, vector<8x128xf32>
    %cst_27 = arith.constant dense<0.000000e+00> : vector<8xf32>
    %53 = vector.multi_reduction <add>, %52, %cst_27 [1] : vector<8x128xf32> to vector<8xf32>
    %54 = vector.shape_cast %53 : vector<8xf32> to vector<8x1xf32>
    %c0_28 = arith.constant 0 : index
    %c0_29 = arith.constant 0 : index
    %55 = vector.load %arg9[%c0_28, %c0_29] : memref<8x1xf32, #tpu.memory_space<vmem>>, vector<8x1xf32>
    tpu.vector_store %arg9[%c0_28, %c0_29], %54 {strides = array<i32>} : memref<8x1xf32, #tpu.memory_space<vmem>>, vector<8x1xf32>,
    return
  }
  func.func @transform_0(%arg0: i32) -> (i32, i32) {
    %c0_i32 = arith.constant 0 : i32
    %c0_i32_0 = arith.constant 0 : i32
    return %arg0, %c0_i32 : i32, i32
  }
  func.func @transform_1(%arg0: i32) -> (i32, i32) {
    %c0_i32 = arith.constant 0 : i32
    %c0_i32_0 = arith.constant 0 : i32
    %c0_i32_1 = arith.constant 0 : i32
    return %c0_i32, %c0_i32_0 : i32, i32
  }
  func.func @transform_2(%arg0: i32) -> (i32, i32) {
    %c0_i32 = arith.constant 0 : i32
    %c0_i32_0 = arith.constant 0 : i32
    %c0_i32_1 = arith.constant 0 : i32
    return %c0_i32, %c0_i32_0 : i32, i32
  }
  func.func @transform_3(%arg0: i32) -> (i32, i32) {
    %c0_i32 = arith.constant 0 : i32
    %c0_i32_0 = arith.constant 0 : i32
    %c0_i32_1 = arith.constant 0 : i32
    return %c0_i32, %c0_i32_0 : i32, i32
  }
  func.func @transform_4(%arg0: i32) -> (i32, i32) {
    %c0_i32 = arith.constant 0 : i32
    %c0_i32_0 = arith.constant 0 : i32
    %c0_i32_1 = arith.constant 0 : i32
    return %c0_i32, %c0_i32_0 : i32, i32
  }
  func.func @transform_5(%arg0: i32) -> (i32, i32) {
    %c0_i32 = arith.constant 0 : i32
    %c0_i32_0 = arith.constant 0 : i32
    %c0_i32_1 = arith.constant 0 : i32
    return %c0_i32, %c0_i32_0 : i32, i32
  }
  func.func @transform_6(%arg0: i32) -> (i32, i32) {
    %c0_i32 = arith.constant 0 : i32
    %c0_i32_0 = arith.constant 0 : i32
    %c0_i32_1 = arith.constant 0 : i32
    return %c0_i32, %c0_i32_0 : i32, i32
  }
  func.func @transform_7(%arg0: i32) -> (i32, i32) {
    %c0_i32 = arith.constant 0 : i32
    %c0_i32_0 = arith.constant 0 : i32
    return %arg0, %c0_i32 : i32, i32
  }
  func.func @transform_8(%arg0: i32) -> (i32, i32) {
    %c0_i32 = arith.constant 0 : i32
    %c0_i32_0 = arith.constant 0 : i32
    return %arg0, %c0_i32 : i32, i32
  }
}

</mosaic_0001>

<llo_original>
// kernel: actor_critic_forward.1
$region0: #{actor_critic_forward.1}
  #allocation0 [shape = 'u32[]', space=smem, size = 0x4, offset = 0x4, fixed_abs, tag = 'smem constant byte address 0x4 - core index']
  #allocation1 [shape = 'u32[144,128]{1,0:T(1,128)}', space=vmem, size = 0x12000, scoped, tag = 'internal scratch']
  %s0 = inlined_call_operand.vmem [shape: f32[8,32], index: 0, kind: input, shape index: {}]
  %s1 = inlined_call_operand.vmem [shape: bf16[32,64], index: 1, kind: input, shape index: {}]
  %s2 = inlined_call_operand.vmem [shape: f32[1,64], index: 2, kind: input, shape index: {}]
  %s3 = inlined_call_operand.vmem [shape: bf16[64,128], index: 3, kind: input, shape index: {}]
  %s4 = inlined_call_operand.vmem [shape: f32[1,128], index: 4, kind: input, shape index: {}]
  %s5 = inlined_call_operand.vmem [shape: bf16[128,128], index: 5, kind: input, shape index: {}]
  %s6 = inlined_call_operand.vmem [shape: f32[1,128], index: 6, kind: input, shape index: {}]
  %s7 = inlined_call_operand.vmem [shape: bf16[8,128], index: 7, kind: output, shape index: {0}]
  %s8 = inlined_call_operand.vmem [shape: f32[8,1], index: 8, kind: output, shape index: {1}]
  %9 = xla_tuple %s7, %s8
  %s10 = sld [smem:[#allocation0]]
  $region46: #{actor_critic_forward.1} parent=0
    _
  %s12 = ssub.s32 1, %s10
  %s13 = scalar_select 0, %s12, %s10
  // Predicated region
  $region2: #{actor_critic_forward.1} parent=0 // pred_check
    _
  $region3: #{actor_critic_forward.1} parent=0 // pred_check_branch
    %15 = sbr.rel (0) target = $region5
  $region4: #{actor_critic_forward.1} parent=0 // pred_region
    _
  $region5: #{actor_critic_forward.1} parent=0 // pred_fallthru
    _
  // Predicated region
  $region6: #{actor_critic_forward.1} parent=0 // pred_check
    _
  $region7: #{actor_critic_forward.1} parent=0 // pred_check_branch
    %17 = sbr.rel (0) target = $region9
  $region8: #{actor_critic_forward.1} parent=0 // pred_region
    _
  $region9: #{actor_critic_forward.1} parent=0 // pred_fallthru
    _
  // Predicated region
  $region10: #{actor_critic_forward.1} parent=0 // pred_check
    _
  $region11: #{actor_critic_forward.1} parent=0 // pred_check_branch
    %19 = sbr.rel (0) target = $region13
  $region12: #{actor_critic_forward.1} parent=0 // pred_region
    _
  $region13: #{actor_critic_forward.1} parent=0 // pred_fallthru
    _
  // Predicated region
  $region14: #{actor_critic_forward.1} parent=0 // pred_check
    _
  $region15: #{actor_critic_forward.1} parent=0 // pred_check_branch
    %21 = sbr.rel (0) target = $region17
  $region16: #{actor_critic_forward.1} parent=0 // pred_region
    _
  $region17: #{actor_critic_forward.1} parent=0 // pred_fallthru
    _
  // Predicated region
  $region18: #{actor_critic_forward.1} parent=0 // pred_check
    _
  $region19: #{actor_critic_forward.1} parent=0 // pred_check_branch
    %23 = sbr.rel (0) target = $region21
  $region20: #{actor_critic_forward.1} parent=0 // pred_region
    _
  $region21: #{actor_critic_forward.1} parent=0 // pred_fallthru
    _
  // Predicated region
  $region22: #{actor_critic_forward.1} parent=0 // pred_check
    _
  $region23: #{actor_critic_forward.1} parent=0 // pred_check_branch
    %25 = sbr.rel (0) target = $region25
  $region24: #{actor_critic_forward.1} parent=0 // pred_region
    _
  $region25: #{actor_critic_forward.1} parent=0 // pred_fallthru
    _
  // Predicated region
  $region26: #{actor_critic_forward.1} parent=0 // pred_check
    _
  $region27: #{actor_critic_forward.1} parent=0 // pred_check_branch
    %27 = sbr.rel (0) target = $region29
  $region28: #{actor_critic_forward.1} parent=0 // pred_region
    _
  $region29: #{actor_critic_forward.1} parent=0 // pred_fallthru
    _
  %v29 = vld [vmem:[%s0] sm:$0xff]
  %v30 = vpack.c.bf16 %v29, %v29
  %v31 = vld [vmem:[%s1] sm:$0xf]
  %v32 = vld [vmem:[%s1 + $0x4] sm:$0xf]
  %v33 = vld [vmem:[%s1 + $0x8] sm:$0xf]
  %v34 = vld [vmem:[%s1 + $0xc] sm:$0xf]
  %v35 = vld [vmem:[%s2] sm:$0x1]
  %v37 = vlaneseq
  %v38 = vshrl.u32 %v37, 7
  %v39 = vsub.s32 0, %v38
  %v40 = vrot.slane %v35, %v39
  %v46 = vunpack.c.l.b16 %v31
  %v47 = vunpack.c.l.b16 %v32
  %v48 = vunpack.c.l.b16 %v33
  %v49 = vunpack.c.l.b16 %v34
  %v50 = vpack.c.b16 %v47, %v46
  %v51 = vpack.c.b16 %v49, %v48
  %vm54 = vcmask 261120
  %v56 = vsel %vm54, %v30, 0
  %58 = vmatprep.subr.bf16.mxu0 0
  %59 = vmatpush1.bf16.msra.mxu0 %v50
  %60 = vmatprep.subr.bf16.mxu0 0
  %61 = vmatpush1.bf16.msra.mxu0 %v51
  %62 = vmatprep.subr.bf16.mxu0 0
  %63 = vmatpush1.bf16.msra.mxu0 0
  %64 = vmatprep.subr.bf16.mxu0 0
  %65 = vmatpush1.bf16.msra.mxu0 0
  %66 = vmatprep.subr.bf16.mxu0 0
  %67 = vmatpush1.bf16.msra.mxu0 0
  %68 = vmatprep.subr.bf16.mxu0 0
  %69 = vmatpush1.bf16.msra.mxu0 0
  %70 = vmatprep.subr.bf16.mxu0 0
  %71 = vmatpush1.bf16.msra.mxu0 0
  %72 = vmatprep.subr.bf16.mxu0 0
  %73 = vmatpush1.bf16.msra.mxu0 0
  %74 = vmatprep.subr.bf16.mxu0 0
  %75 = vmatpush1.bf16.msra.mxu0 0
  %76 = vmatprep.subr.bf16.mxu0 0
  %77 = vmatpush1.bf16.msra.mxu0 0
  %78 = vmatprep.subr.bf16.mxu0 0
  %79 = vmatpush1.bf16.msra.mxu0 0
  %80 = vmatprep.subr.bf16.mxu0 0
  %81 = vmatpush1.bf16.msra.mxu0 0
  %82 = vmatprep.subr.bf16.mxu0 0
  %83 = vmatpush1.bf16.msra.mxu0 0
  %84 = vmatprep.subr.bf16.mxu0 0
  %85 = vmatpush1.bf16.msra.mxu0 0
  %86 = vmatprep.subr.bf16.mxu0 0
  %87 = vmatpush1.bf16.msra.mxu0 0
  %88 = vmatprep.subr.bf16.mxu0 0
  %89 = vmatpush1.bf16.msra.mxu0 0
  %90 = vmatprep.mubr.bf16.mxu0 0
  %91 = vmatmul.mubr.bf16.gmra.mrb[0].mxu0 %v56
  %v92 = vpop.f32.mrb[0].mxu0
  %v93 = vadd.f32 %v40, %v92
  %v94 = vpop.f32.mrb[0].mxu0
  %v95 = vpop.f32.mrb[0].mxu0
  %v96 = vpop.f32.mrb[0].mxu0
  %97 = vdwg.mxu0
  %v98 = vmax.f32 %v93, 0.0
  %v99 = vpack.c.bf16 %v98, %v98
  %v100 = vld [vmem:[%s3] sm:$0xf]
  %v101 = vld [vmem:[%s3 + $0x4] sm:$0xf]
  %v102 = vld [vmem:[%s3 + $0x8] sm:$0xf]
  %v103 = vld [vmem:[%s3 + $0xc] sm:$0xf]
  %v104 = vld [vmem:[%s3 + $0x10] sm:$0xf]
  %v105 = vld [vmem:[%s3 + $0x14] sm:$0xf]
  %v106 = vld [vmem:[%s3 + $0x18] sm:$0xf]
  %v107 = vld [vmem:[%s3 + $0x1c] sm:$0xf]
  %v108 = vld [vmem:[%s4] sm:$0x1]
  %v110 = vlaneseq
  %v111 = vshrl.u32 %v110, 7
  %v112 = vsub.s32 0, %v111
  %v113 = vrot.slane %v108, %v112
  %v123 = vunpack.c.l.b16 %v100
  %v124 = vunpack.c.l.b16 %v101
  %v125 = vunpack.c.l.b16 %v102
  %v126 = vunpack.c.l.b16 %v103
  %v127 = vunpack.c.l.b16 %v104
  %v128 = vunpack.c.l.b16 %v105
  %v129 = vunpack.c.l.b16 %v106
  %v130 = vunpack.c.l.b16 %v107
  %v131 = vpack.c.b16 %v124, %v123
  %v132 = vpack.c.b16 %v126, %v125
  %v133 = vpack.c.b16 %v128, %v127
  %v134 = vpack.c.b16 %v130, %v129
  %vm139 = vcmask 523264
  %v141 = vsel %vm139, %v99, 0
  %143 = vmatprep.subr.bf16.mxu0 0
  %144 = vmatpush1.bf16.msra.mxu0 %v131
  %145 = vmatprep.subr.bf16.mxu0 0
  %146 = vmatpush1.bf16.msra.mxu0 %v132
  %147 = vmatprep.subr.bf16.mxu0 0
  %148 = vmatpush1.bf16.msra.mxu0 %v133
  %149 = vmatprep.subr.bf16.mxu0 0
  %150 = vmatpush1.bf16.msra.mxu0 %v134
  %151 = vmatprep.subr.bf16.mxu0 0
  %152 = vmatpush1.bf16.msra.mxu0 0
  %153 = vmatprep.subr.bf16.mxu0 0
  %154 = vmatpush1.bf16.msra.mxu0 0
  %155 = vmatprep.subr.bf16.mxu0 0
  %156 = vmatpush1.bf16.msra.mxu0 0
  %157 = vmatprep.subr.bf16.mxu0 0
  %158 = vmatpush1.bf16.msra.mxu0 0
  %159 = vmatprep.subr.bf16.mxu0 0
  %160 = vmatpush1.bf16.msra.mxu0 0
  %161 = vmatprep.subr.bf16.mxu0 0
  %162 = vmatpush1.bf16.msra.mxu0 0
  %163 = vmatprep.subr.bf16.mxu0 0
  %164 = vmatpush1.bf16.msra.mxu0 0
  %165 = vmatprep.subr.bf16.mxu0 0
  %166 = vmatpush1.bf16.msra.mxu0 0
  %167 = vmatprep.subr.bf16.mxu0 0
  %168 = vmatpush1.bf16.msra.mxu0 0
  %169 = vmatprep.subr.bf16.mxu0 0
  %170 = vmatpush1.bf16.msra.mxu0 0
  %171 = vmatprep.subr.bf16.mxu0 0
  %172 = vmatpush1.bf16.msra.mxu0 0
  %173 = vmatprep.subr.bf16.mxu0 0
  %174 = vmatpush1.bf16.msra.mxu0 0
  %175 = vmatprep.mubr.bf16.mxu0 0
  %176 = vmatmul.mubr.bf16.gmra.mrb[0].mxu0 %v141
  %v177 = vpop.f32.mrb[0].mxu0
  %v178 = vadd.f32 %v113, %v177
  %v179 = vpop.f32.mrb[0].mxu0
  %v180 = vpop.f32.mrb[0].mxu0
  %v181 = vpop.f32.mrb[0].mxu0
  %182 = vdwg.mxu0
  %v183 = vmax.f32 %v178, 0.0
  %v184 = vpack.c.bf16 %v183, %v183
  %v185 = vld [vmem:[%s5] sm:$0xf]
  %v186 = vld [vmem:[%s5 + $0x4] sm:$0xf]
  %v187 = vld [vmem:[%s5 + $0x8] sm:$0xf]
  %v188 = vld [vmem:[%s5 + $0xc] sm:$0xf]
  %v189 = vld [vmem:[%s5 + $0x10] sm:$0xf]
  %v190 = vld [vmem:[%s5 + $0x14] sm:$0xf]
  %v191 = vld [vmem:[%s5 + $0x18] sm:$0xf]
  %v192 = vld [vmem:[%s5 + $0x1c] sm:$0xf]
  %v193 = vld [vmem:[%s5 + $0x20] sm:$0xf]
  %v194 = vld [vmem:[%s5 + $0x24] sm:$0xf]
  %v195 = vld [vmem:[%s5 + $0x28] sm:$0xf]
  %v196 = vld [vmem:[%s5 + $0x2c] sm:$0xf]
  %v197 = vld [vmem:[%s5 + $0x30] sm:$0xf]
  %v198 = vld [vmem:[%s5 + $0x34] sm:$0xf]
  %v199 = vld [vmem:[%s5 + $0x38] sm:$0xf]
  %v200 = vld [vmem:[%s5 + $0x3c] sm:$0xf]
  %v201 = vld [vmem:[%s6] sm:$0x1]
  %v203 = vlaneseq
  %v204 = vshrl.u32 %v203, 7
  %v205 = vsub.s32 0, %v204
  %v206 = vrot.slane %v201, %v205
  %v224 = vunpack.c.l.b16 %v185
  %v225 = vunpack.c.l.b16 %v186
  %v226 = vunpack.c.l.b16 %v187
  %v227 = vunpack.c.l.b16 %v188
  %v228 = vunpack.c.l.b16 %v189
  %v229 = vunpack.c.l.b16 %v190
  %v230 = vunpack.c.l.b16 %v191
  %v231 = vunpack.c.l.b16 %v192
  %v232 = vunpack.c.l.b16 %v193
  %v233 = vunpack.c.l.b16 %v194
  %v234 = vunpack.c.l.b16 %v195
  %v235 = vunpack.c.l.b16 %v196
  %v236 = vunpack.c.l.b16 %v197
  %v237 = vunpack.c.l.b16 %v198
  %v238 = vunpack.c.l.b16 %v199
  %v239 = vunpack.c.l.b16 %v200
  %v240 = vpack.c.b16 %v225, %v224
  %v241 = vpack.c.b16 %v227, %v226
  %v242 = vpack.c.b16 %v229, %v228
  %v243 = vpack.c.b16 %v231, %v230
  %v244 = vpack.c.b16 %v233, %v232
  %v245 = vpack.c.b16 %v235, %v234
  %v246 = vpack.c.b16 %v237, %v236
  %v247 = vpack.c.b16 %v239, %v238
  %256 = vmatprep.subr.bf16.mxu0 0
  %257 = vmatpush1.bf16.msra.mxu0 %v240
  %258 = vmatprep.subr.bf16.mxu0 0
  %259 = vmatpush1.bf16.msra.mxu0 %v241
  %260 = vmatprep.subr.bf16.mxu0 0
  %261 = vmatpush1.bf16.msra.mxu0 %v242
  %262 = vmatprep.subr.bf16.mxu0 0
  %263 = vmatpush1.bf16.msra.mxu0 %v243
  %264 = vmatprep.subr.bf16.mxu0 0
  %265 = vmatpush1.bf16.msra.mxu0 %v244
  %266 = vmatprep.subr.bf16.mxu0 0
  %267 = vmatpush1.bf16.msra.mxu0 %v245
  %268 = vmatprep.subr.bf16.mxu0 0
  %269 = vmatpush1.bf16.msra.mxu0 %v246
  %270 = vmatprep.subr.bf16.mxu0 0
  %271 = vmatpush1.bf16.msra.mxu0 %v247
  %272 = vmatprep.subr.bf16.mxu0 0
  %273 = vmatpush1.bf16.msra.mxu0 0
  %274 = vmatprep.subr.bf16.mxu0 0
  %275 = vmatpush1.bf16.msra.mxu0 0
  %276 = vmatprep.subr.bf16.mxu0 0
  %277 = vmatpush1.bf16.msra.mxu0 0
  %278 = vmatprep.subr.bf16.mxu0 0
  %279 = vmatpush1.bf16.msra.mxu0 0
  %280 = vmatprep.subr.bf16.mxu0 0
  %281 = vmatpush1.bf16.msra.mxu0 0
  %282 = vmatprep.subr.bf16.mxu0 0
  %283 = vmatpush1.bf16.msra.mxu0 0
  %284 = vmatprep.subr.bf16.mxu0 0
  %285 = vmatpush1.bf16.msra.mxu0 0
  %286 = vmatprep.subr.bf16.mxu0 0
  %287 = vmatpush1.bf16.msra.mxu0 0
  %288 = vmatprep.mubr.bf16.mxu0 0
  %289 = vmatmul.mubr.bf16.gmra.mrb[0].mxu0 %v184
  %v290 = vpop.f32.mrb[0].mxu0
  %v291 = vadd.f32 %v206, %v290
  %v292 = vpop.f32.mrb[0].mxu0
  %v293 = vpop.f32.mrb[0].mxu0
  %v294 = vpop.f32.mrb[0].mxu0
  %295 = vdwg.mxu0
  %v296 = vlaneseq
  %v297 = vand.u32 %v296, 127
  %v298 = vlaneseq
  %v299 = vshrl.u32 %v298, 7
  %s300 = smul.u32 0, 8
  %v301 = vstv %s300
  %v302 = vadd.s32 %v299, %v301
  %vm303 = vcmp.lt.s32.totalorder %v297, 8
  %vm304 = vcmp.lt.s32.totalorder %v302, 8
  %v305 = vsel %vm303, %v291, -1e+30
  %306 = vmax.xlane.f32.xlu0 %v305
  %v307 = vpop.xlane.xlu0 %306
  %v308 = vsub.f32 %v305, %v307
  %v309 = vmul.f32 %v308, 1.442695
  %v310 = vpow.pop %v309
  %311 = vadd.xlane.f32.xlu0 %v310
  %v312 = vpop.xlane.xlu0 %311
  %v313 = vrcp.pop %v312
  %v314 = vmul.f32 %v310, %v313
  %vm315 = vmand %vm304, %vm303
  %v316 = vsel %vm315, %v314, 0.0
  %v317 = vpack.c.bf16 %v316, %v316
  %318 = vst [vmem:[%s7] sm:$0xf] %v317
  %vm319 = vcmp.eq.s32.totalorder %v297, 8
  %vm320 = vmand %vm304, %vm319
  %v321 = vsel %vm320, %v291, 0.0
  %322 = vadd.xlane.f32.xlu0 %v321
  %v323 = vpop.xlane.xlu0 %322
  %vm324 = vcmask 7168
  %325 = vst.msk [vmem:[%s8] sm:$0xff] %vm324, %v323
  // Predicated region
  $region30: #{actor_critic_forward.1} parent=0 // pred_check
    _
  $region31: #{actor_critic_forward.1} parent=0 // pred_check_branch
    %327 = sbr.rel (0) target = $region33
  $region32: #{actor_critic_forward.1} parent=0 // pred_region
    _
  $region33: #{actor_critic_forward.1} parent=0 // pred_fallthru
    _
  // Predicated region
  $region34: #{actor_critic_forward.1} parent=0 // pred_check
    _
  $region35: #{actor_critic_forward.1} parent=0 // pred_check_branch
    %329 = sbr.rel (0) target = $region37
  $region36: #{actor_critic_forward.1} parent=0 // pred_region
    _
  $region37: #{actor_critic_forward.1} parent=0 // pred_fallthru
    _
  // Predicated region
  $region38: #{actor_critic_forward.1} parent=0 // pred_check
    _
  $region39: #{actor_critic_forward.1} parent=0 // pred_check_branch
    %331 = sbr.rel (0) target = $region41
  $region40: #{actor_critic_forward.1} parent=0 // pred_region
    _
  $region41: #{actor_critic_forward.1} parent=0 // pred_fallthru
    _
  // Predicated region
  $region42: #{actor_critic_forward.1} parent=0 // pred_check
    _
  $region43: #{actor_critic_forward.1} parent=0 // pred_check_branch
    %333 = sbr.rel (0) target = $region45
  $region44: #{actor_critic_forward.1} parent=0 // pred_region
    _
  $region45: #{actor_critic_forward.1} parent=0 // pred_fallthru
    _

</llo_original>
